<compile_context>
chip_gen: v6e
topology: v6e:2x2x1
jax: 0.10.0
libtpu: 0.0.40
codegen_flags: <defaults>
</compile_context>

<pallas_src>
import functools

import jax
import jax.numpy as jnp
from jax import lax
from jax.experimental import pallas as pl
from jax.experimental.pallas import tpu as pltpu


def _yolo_decode_kernel(ch_ref, p_ref, out_ref, *, hw, ng, rows_per_block):
    """Decode one (rows, C) tile of the permuted head output.

    Layout: row r = b*HW + g1*nG + g2, channel c = a*(5+nC) + k, which is
    exactly the flat memory layout of (B, nG, nG, nA, 5+nC), so the output
    reshapes to the final (-1, 5+nC) with zero extra HBM traffic.

    ch_ref : (4, C)     per-channel [scale, is_wh, is_x, is_y]
    p_ref  : (rows, C)  raw head outputs
    out    = (f(p) + is_x*g1 + is_y*g2) * scale
      f = exp      for the w/h channels (is_wh == 1)
      f = sigmoid  otherwise
    """
    p = p_ref[...].astype(jnp.float32)                 # (R, C)
    ch = ch_ref[...]                                   # (4, C)
    scale = ch[0:1, :]                                 # (1, C)
    is_wh = ch[1:2, :] > 0.5                           # (1, C) bool
    is_x = ch[2:3, :]                                  # (1, C)
    is_y = ch[3:4, :]                                  # (1, C)

    # Global flat row index r = b*HW + g1*nG + g2 recovered with exact f32
    # integer arithmetic (all values << 2^24); the +0.5 makes floor robust
    # against division rounding.
    r0 = pl.program_id(0) * rows_per_block
    r = (lax.broadcasted_iota(jnp.int32, p.shape, 0) + r0).astype(jnp.float32)
    b = jnp.floor((r + 0.5) * (1.0 / hw))
    s = r - b * hw                                     # g1*nG + g2
    g1 = jnp.floor((s + 0.5) * (1.0 / ng))             # first spatial index
    g2 = s - g1 * ng                                   # second spatial index
    off = is_x * g1 + is_y * g2                        # (R, C)

    # Single transcendental per element: the exp is shared between the
    # exp(w,h) path and the stable sigmoid 1/(1+exp(-p)); the reciprocal
    # rides the otherwise-idle EUP slot.
    t = jnp.where(is_wh, p, -p)
    e = jnp.exp(t)
    val = jnp.where(is_wh, e, pl.reciprocal(1.0 + e, approx=True))

    out_ref[...] = ((val + off) * scale).astype(out_ref.dtype)


def _pick_row_tile(total_rows, c, *, max_block_bytes=8 * 1024 * 1024):
    """Row tile: multiple of 8, ~8 MiB VMEM-padded block, >= 2 grid steps."""
    # VMEM lane-pads the last dim to a multiple of 128 (f32).
    padded_row_bytes = 4 * 128 * ((c + 127) // 128)
    cap = max(8, (max_block_bytes // padded_row_bytes) // 8 * 8)
    if total_rows >= 16:
        # Keep at least 2 grid steps so both v7x TensorCores get work; the
        # extra step costs ~0.35us on single-TC v5e/v6e (negligible).
        cap = min(cap, max(8, (total_rows // 2 // 8) * 8))
    if total_rows <= cap:
        return total_rows        # single full-extent block (always legal)
    return cap


@functools.partial(jax.jit, static_argnames=("nC", "stride"))
def yolo_head_forward(x, anchors, *, nC, stride):
    """Replicates Yolo_head.forward (eval mode) -> (p_perm, p_decode)."""
    B = x.shape[0]
    nG = x.shape[-1]
    nA = anchors.shape[0]
    D = 5 + nC
    C = nA * D
    HW = nG * nG
    R = B * HW

    # ---- layout glue identical to the PyTorch view + permute -------------
    p_view = x.reshape(B, nA, D, nG, nG)
    p_perm = jnp.transpose(p_view, (0, 3, 4, 1, 2))      # (B, nG, nG, nA, D)

    # ---- tiny batch-invariant per-channel table (KBs, computed once) -----
    c_idx = jnp.arange(C)
    k_idx = c_idx % D                                    # attribute index
    a_idx = c_idx // D                                   # anchor index
    anchors_f = anchors.astype(jnp.float32)
    anchor_k = anchors_f[a_idx, jnp.clip(k_idx - 2, 0, 1)]   # (C,)
    is_wh_c = (k_idx >= 2) & (k_idx < 4)
    ch_scale = jnp.where(k_idx < 2, jnp.float32(stride),
                         jnp.where(is_wh_c, anchor_k * jnp.float32(stride),
                                   jnp.float32(1.0)))
    ch_tbl = jnp.stack([ch_scale,
                        is_wh_c.astype(jnp.float32),
                        (k_idx == 0).astype(jnp.float32),
                        (k_idx == 1).astype(jnp.float32)], axis=0)   # (4, C)

    # ---- Pallas decode directly in the permuted (row-major) layout -------
    p_rows = p_perm.reshape(R, C)                        # free (contiguous) view
    rows_t = _pick_row_tile(R, C)
    n_steps = pl.cdiv(R, rows_t)

    kernel = functools.partial(_yolo_decode_kernel,
                               hw=float(HW), ng=float(nG),
                               rows_per_block=rows_t)

    decoded = pl.pallas_call(
        kernel,
        out_shape=jax.ShapeDtypeStruct((R, C), jnp.float32),
        grid_spec=pltpu.PrefetchScalarGridSpec(
            num_scalar_prefetch=0,
            grid=(n_steps,),
            in_specs=[
                pl.BlockSpec((4, C), lambda t: (0, 0)),
                pl.BlockSpec((rows_t, C), lambda t: (t, 0)),
            ],
            out_specs=pl.BlockSpec((rows_t, C), lambda t: (t, 0)),
        ),
        compiler_params=pltpu.CompilerParams(
            dimension_semantics=("parallel",),
            vmem_limit_bytes=48 * 1024 * 1024),
        cost_estimate=pl.CostEstimate(
            flops=10 * R * C,
            transcendentals=R * C,
            bytes_accessed=2 * R * C * 4 + 4 * C * 4),
    )(ch_tbl, p_rows)

    # Flat memory of `decoded` already matches (b, g1, g2, a, k) ordering.
    p_decode = decoded.reshape(-1, D)                    # eval-mode .view(-1, 5+nC)
    return p_perm, p_decode


def _reference_decode(p_perm, anchors, stride):
    """Pure-JAX reference mirroring the PyTorch __decode exactly."""
    B, nG, _, nA, D = p_perm.shape
    dxdy = p_perm[..., 0:2]
    dwdh = p_perm[..., 2:4]
    conf = p_perm[..., 4:5]
    prob = p_perm[..., 5:]
    idx = jnp.arange(nG, dtype=jnp.float32)
    gx = jnp.broadcast_to(idx[:, None], (nG, nG))        # value = first index
    gy = jnp.broadcast_to(idx[None, :], (nG, nG))        # value = second index
    grid = jnp.stack([gx, gy], -1)[None, :, :, None, :]
    pred_xy = (jax.nn.sigmoid(dxdy) + grid) * stride
    pred_wh = jnp.exp(dwdh) * anchors[None, None, None, :, :] * stride
    pred_conf = jax.nn.sigmoid(conf)
    pred_prob = jax.nn.sigmoid(prob)
    bbox = jnp.concatenate([pred_xy, pred_wh, pred_conf, pred_prob], -1)
    return bbox.reshape(-1, D)


if __name__ == "__main__":
    # Small, deterministic config: nC=4 classes, 3 anchors, stride 8, 16x16 grid.
    nC = 4
    stride = 8.0
    anchors = jnp.array([[1.25, 1.625],
                         [2.0, 3.75],
                         [4.125, 2.875]], dtype=jnp.float32)
    nA = anchors.shape[0]
    B, nG = 2, 16

    key = jax.random.PRNGKey(0)
    x = jax.random.normal(key, (B, nA * (5 + nC), nG, nG), dtype=jnp.float32)

    p_perm, p_decode = yolo_head_forward(x, anchors, nC=nC, stride=stride)
    jax.block_until_ready(p_decode)

    # Sanity check against pure-JAX reference (PyTorch-equivalent semantics).
    # Tolerance is loosened slightly because the sigmoid uses the EUP
    # approximate reciprocal (approx=True), ~1e-4..1e-3 relative error class.
    ref = _reference_decode(p_perm.astype(jnp.float32), anchors, stride)
    assert p_perm.shape == (B, nG, nG, nA, 5 + nC)
    assert p_decode.shape == (B * nG * nG * nA, 5 + nC)
    assert jnp.allclose(p_decode, ref, atol=1e-2, rtol=1e-2)

    print("KERNEL_OK")
</pallas_src>

<mosaic_0001>
module attributes {stable_mosaic.version = 11 : i64} {
  func.func @_yolo_decode_kernel(%arg0: i32, %arg1: memref<4x27xf32, #tpu.memory_space<vmem>>, %arg2: memref<256x27xf32, #tpu.memory_space<vmem>>, %arg3: memref<256x27xf32, #tpu.memory_space<vmem>>) attributes {dimension_semantics = [#tpu.dimension_semantics<parallel>], iteration_bounds = array<i64: 2>, scalar_prefetch = 0 : i64, scratch_operands = 0 : i64, tpu.core_type = #tpu.core_type<tc>, window_params = [{pipeline_mode = #tpu.pipeline_mode<synchronous>, transform_indices = @transform_0, window_bounds = array<i64: 4, 27>}, {transform_indices = @transform_1, window_bounds = array<i64: 256, 27>}, {transform_indices = @transform_2, window_bounds = array<i64: 256, 27>}]} {
    %c0 = arith.constant 0 : index
    %c0_0 = arith.constant 0 : index
    %0 = vector.load %arg2[%c0, %c0_0] : memref<256x27xf32, #tpu.memory_space<vmem>>, vector<256x27xf32>
    %c0_1 = arith.constant 0 : index
    %c0_2 = arith.constant 0 : index
    %1 = vector.load %arg1[%c0_1, %c0_2] : memref<4x27xf32, #tpu.memory_space<vmem>>, vector<4x27xf32>
    %2 = vector.extract_strided_slice %1 {offsets = [0, 0], sizes = [1, 27], strides = [1, 1]} : vector<4x27xf32> to vector<1x27xf32>
    %3 = vector.extract_strided_slice %1 {offsets = [1, 0], sizes = [1, 27], strides = [1, 1]} : vector<4x27xf32> to vector<1x27xf32>
    %cst = arith.constant 5.000000e-01 : f32
    %4 = vector.broadcast %cst : f32 to vector<1x27xf32>
    %5 = arith.cmpf ogt, %3, %4 : vector<1x27xf32>
    %6 = vector.extract_strided_slice %1 {offsets = [2, 0], sizes = [1, 27], strides = [1, 1]} : vector<4x27xf32> to vector<1x27xf32>
    %7 = vector.extract_strided_slice %1 {offsets = [3, 0], sizes = [1, 27], strides = [1, 1]} : vector<4x27xf32> to vector<1x27xf32>
    %c256_i32 = arith.constant 256 : i32
    %8 = arith.muli %arg0, %c256_i32 : i32
    %9 = tpu.iota {dimensions = array<i32: 0>} : vector<256x27xi32>
    %10 = vector.broadcast %8 : i32 to vector<256x27xi32>
    %11 = arith.addi %9, %10 : vector<256x27xi32>
    %12 = arith.sitofp %11 : vector<256x27xi32> to vector<256x27xf32>
    %cst_3 = arith.constant 5.000000e-01 : f32
    %13 = vector.broadcast %cst_3 : f32 to vector<256x27xf32>
    %14 = arith.addf %12, %13 : vector<256x27xf32>
    %cst_4 = arith.constant 3.906250e-03 : f32
    %15 = vector.broadcast %cst_4 : f32 to vector<256x27xf32>
    %16 = arith.mulf %14, %15 : vector<256x27xf32>
    %17 = math.floor %16 : vector<256x27xf32>
    %cst_5 = arith.constant 2.560000e+02 : f32
    %18 = vector.broadcast %cst_5 : f32 to vector<256x27xf32>
    %19 = arith.mulf %17, %18 : vector<256x27xf32>
    %20 = arith.subf %12, %19 : vector<256x27xf32>
    %cst_6 = arith.constant 5.000000e-01 : f32
    %21 = vector.broadcast %cst_6 : f32 to vector<256x27xf32>
    %22 = arith.addf %20, %21 : vector<256x27xf32>
    %cst_7 = arith.constant 6.250000e-02 : f32
    %23 = vector.broadcast %cst_7 : f32 to vector<256x27xf32>
    %24 = arith.mulf %22, %23 : vector<256x27xf32>
    %25 = math.floor %24 : vector<256x27xf32>
    %cst_8 = arith.constant 1.600000e+01 : f32
    %26 = vector.broadcast %cst_8 : f32 to vector<256x27xf32>
    %27 = arith.mulf %25, %26 : vector<256x27xf32>
    %28 = arith.subf %20, %27 : vector<256x27xf32>
    %29 = vector.broadcast %6 : vector<1x27xf32> to vector<256x27xf32>
    %30 = arith.mulf %29, %25 : vector<256x27xf32>
    %31 = vector.broadcast %7 : vector<1x27xf32> to vector<256x27xf32>
    %32 = arith.mulf %31, %28 : vector<256x27xf32>
    %33 = arith.addf %30, %32 : vector<256x27xf32>
    %cst_9 = arith.constant 0.000000e+00 : f32
    %34 = vector.broadcast %cst_9 : f32 to vector<256x27xf32>
    %35 = arith.subf %34, %0 : vector<256x27xf32>
    %36 = vector.shape_cast %5 : vector<1x27xi1> to vector<1x27xi1>
    %37 = vector.broadcast %36 : vector<1x27xi1> to vector<256x27xi1>
    %38 = arith.select %37, %0, %35 : vector<256x27xi1>, vector<256x27xf32>
    %39 = math.exp %38 : vector<256x27xf32>
    %cst_10 = arith.constant 1.000000e+00 : f32
    %40 = vector.broadcast %cst_10 : f32 to vector<256x27xf32>
    %41 = arith.addf %40, %39 : vector<256x27xf32>
    %42 = tpu.reciprocal %41 {approx = true} : vector<256x27xf32> -> vector<256x27xf32>
    %43 = vector.shape_cast %5 : vector<1x27xi1> to vector<1x27xi1>
    %44 = vector.broadcast %43 : vector<1x27xi1> to vector<256x27xi1>
    %45 = arith.select %44, %39, %42 : vector<256x27xi1>, vector<256x27xf32>
    %46 = arith.addf %45, %33 : vector<256x27xf32>
    %47 = vector.broadcast %2 : vector<1x27xf32> to vector<256x27xf32>
    %48 = arith.mulf %46, %47 : vector<256x27xf32>
    %c0_11 = arith.constant 0 : index
    %c0_12 = arith.constant 0 : index
    %49 = vector.load %arg3[%c0_11, %c0_12] : memref<256x27xf32, #tpu.memory_space<vmem>>, vector<256x27xf32>
    tpu.vector_store %arg3[%c0_11, %c0_12], %48 {strides = array<i32>} : memref<256x27xf32, #tpu.memory_space<vmem>>, vector<256x27xf32>,
    return
  }
  func.func @transform_0(%arg0: i32) -> (i32, i32) {
    %c0_i32 = arith.constant 0 : i32
    %c0_i32_0 = arith.constant 0 : i32
    %c0_i32_1 = arith.constant 0 : i32
    return %c0_i32, %c0_i32_0 : i32, i32
  }
  func.func @transform_1(%arg0: i32) -> (i32, i32) {
    %c0_i32 = arith.constant 0 : i32
    %c0_i32_0 = arith.constant 0 : i32
    return %arg0, %c0_i32 : i32, i32
  }
  func.func @transform_2(%arg0: i32) -> (i32, i32) {
    %c0_i32 = arith.constant 0 : i32
    %c0_i32_0 = arith.constant 0 : i32
    return %arg0, %c0_i32 : i32, i32
  }
}

</mosaic_0001>

<llo_original>
// kernel: yolo_head_forward.1
$region0: #{yolo_head_forward.1}
  #allocation0 [shape = 'u32[]', space=smem, size = 0x4, offset = 0x4, fixed_abs, tag = 'smem constant byte address 0x4 - core index']
  #allocation1 [shape = 'u32[144,128]{1,0:T(1,128)}', space=vmem, size = 0x12000, scoped, tag = 'internal scratch']
  %s0 = inlined_call_operand.vmem [shape: f32[4,27], index: 0, kind: input, shape index: {}]
  %s1 = inlined_call_operand.vmem [shape: f32[512,27], index: 1, kind: input, shape index: {}]
  %s2 = inlined_call_operand.vmem [shape: f32[512,27], index: 2, kind: output, shape index: {}]
  %s3 = sld [smem:[#allocation0]]
  $region41: #{yolo_head_forward.1} parent=0
    _
  %s5 = ssub.s32 1, %s3
  %s6 = scalar_select 0, %s5, %s3
  loop: start=0, step=1, limit=4
  $region2: #{yolo_head_forward.1} parent=0 // loop_pre_header
    _
  $region3: #{yolo_head_forward.1} parent=0 // loop_header
    %s8 = sphi 0, %s12
    %p9 = scmp.ge.s32.totalorder %s8, 4
    %s16 = sphi 0, %s16
    %s18 = sphi 0, %s16
    %s19 = sphi 0, %s18
    %s33 = sphi 0, %s19
    %s39 = sphi 0, %s41
    %s42 = sphi 0, %s39
    %s43 = sphi 0, %s42
    %s59 = sphi 0, %s43
    %s65 = sphi 0, %s67
    %s68 = sphi 0, %s65
    %s69 = sphi 0, %s68
    %s85 = sphi 0, %s69
  $region4: #{yolo_head_forward.1} parent=0 // loop_header_branch
    %11 = sbr.rel (%p9) target = $region8
  $region5: #{yolo_head_forward.1} parent=0 // loop_body
    %s13 = ssub.s32 %s8, 1
    %s14 = ssub.s32 %s8, 2
    %s15 = sadd.s32 %s8, 1
    %s17 = sadd.s32 %s16, 1
    %p20 = scmp.eq.s32.totalorder %s8, 1
    %p21 = scmp.ne.s32.totalorder %s16, %s18
    %p22 = scmp.eq.s32.totalorder %s8, 0
    %p23 = por %p21, %p22
    %p24 = scmp.ne.s32.totalorder %s16, %s18
    %p25 = scmp.eq.s32.totalorder %s13, 1
    %p26 = por %p24, %p25
    %p27 = scmp.ne.s32.totalorder %s18, %s19
    %p28 = scmp.eq.s32.totalorder %s13, 0
    %p29 = por %p27, %p28
    %p30 = scmp.ne.s32.totalorder %s18, %s19
    %p31 = scmp.eq.s32.totalorder %s14, 1
    %p32 = por %p30, %p31
    %p34 = scmp.ne.s32.totalorder %s19, %s33
    %p35 = scmp.eq.s32.totalorder %s14, 0
    %p36 = por %p34, %p35
    %s37 = ssub.s32 %s8, %s15
    %p38 = scmp.eq.s32.totalorder %s37, 0
    %s40 = sadd.s32 %s39, 1
    %s41 = scalar_select %p38, %s39, %s40
    %p44 = pneg %p38
    %p45 = scmp.eq.s32.totalorder %s8, 1
    %p46 = por %p44, %p45
    %p47 = scmp.ne.s32.totalorder %s39, %s42
    %p48 = scmp.eq.s32.totalorder %s8, 0
    %p49 = por %p47, %p48
    %p50 = scmp.ne.s32.totalorder %s39, %s42
    %p51 = scmp.eq.s32.totalorder %s13, 1
    %p52 = por %p50, %p51
    %p53 = scmp.ne.s32.totalorder %s42, %s43
    %p54 = scmp.eq.s32.totalorder %s13, 0
    %p55 = por %p53, %p54
    %p56 = scmp.ne.s32.totalorder %s42, %s43
    %p57 = scmp.eq.s32.totalorder %s14, 1
    %p58 = por %p56, %p57
    %p60 = scmp.ne.s32.totalorder %s43, %s59
    %p61 = scmp.eq.s32.totalorder %s14, 0
    %p62 = por %p60, %p61
    %s63 = ssub.s32 %s8, %s15
    %p64 = scmp.eq.s32.totalorder %s63, 0
    %s66 = sadd.s32 %s65, 1
    %s67 = scalar_select %p64, %s65, %s66
    %p70 = pneg %p64
    %p71 = scmp.eq.s32.totalorder %s8, 1
    %p72 = por %p70, %p71
    %p73 = scmp.ne.s32.totalorder %s65, %s68
    %p74 = scmp.eq.s32.totalorder %s8, 0
    %p75 = por %p73, %p74
    %p76 = scmp.ne.s32.totalorder %s65, %s68
    %p77 = scmp.eq.s32.totalorder %s13, 1
    %p78 = por %p76, %p77
    %p79 = scmp.ne.s32.totalorder %s68, %s69
    %p80 = scmp.eq.s32.totalorder %s13, 0
    %p81 = por %p79, %p80
    %p82 = scmp.ne.s32.totalorder %s68, %s69
    %p83 = scmp.eq.s32.totalorder %s14, 1
    %p84 = por %p82, %p83
    %p86 = scmp.ne.s32.totalorder %s69, %s85
    %p87 = scmp.eq.s32.totalorder %s14, 0
    %p88 = por %p86, %p87
    %p89 = scmp.le.s32.totalorder 1, %s8
    %p90 = scmp.lt.s32.totalorder %s8, 3
    %p91 = pnand %p89, %p90
    %p92 = pneg %p91
    // Predicated region
    $region9: #{yolo_head_forward.1} parent=5 // pred_check
      _
    $region10: #{yolo_head_forward.1} parent=5 // pred_check_branch
      %94 = sbr.rel (%p91) target = $region12
    $region11: #{yolo_head_forward.1} parent=5 // pred_region
      %s95 = ssub.s32 %s8, 1
      // Predicated region
      $region13: #{yolo_head_forward.1} parent=11 // pred_check
        %p96 = pneg %p29
      $region14: #{yolo_head_forward.1} parent=11 // pred_check_branch
        %98 = sbr.rel (%p96) target = $region16
      $region15: #{yolo_head_forward.1} parent=11 // pred_region
        _
      $region16: #{yolo_head_forward.1} parent=11 // pred_fallthru
        _
    $region12: #{yolo_head_forward.1} parent=5 // pred_fallthru
      _
    %p99 = scmp.lt.s32.totalorder %s8, 2
    // Predicated region
    $region17: #{yolo_head_forward.1} parent=5 // pred_check
      %p100 = pneg %p99
    $region18: #{yolo_head_forward.1} parent=5 // pred_check_branch
      %102 = sbr.rel (%p100) target = $region20
    $region19: #{yolo_head_forward.1} parent=5 // pred_region
      // Predicated region
      $region21: #{yolo_head_forward.1} parent=19 // pred_check
        %p103 = pneg %p49
      $region22: #{yolo_head_forward.1} parent=19 // pred_check_branch
        %105 = sbr.rel (%p103) target = $region24
      $region23: #{yolo_head_forward.1} parent=19 // pred_region
        %s106 = smul.u32 32, %s8
        %p107 = scmp.lt.s32.totalorder %s106, 63
        %s108 = scalar_select %p107, %s106, 63
        %s109 = smul.addr %s108, 8
        %s110 = scalar_lea.vmem %s1, %s109
        %s111 = smul.u32 32, %s8
      $region24: #{yolo_head_forward.1} parent=19 // pred_fallthru
        _
    $region20: #{yolo_head_forward.1} parent=5 // pred_fallthru
      _
    %p112 = scmp.le.s32.totalorder 1, %s8
    %p113 = scmp.lt.s32.totalorder %s8, 3
    %p114 = pnand %p112, %p113
    %p115 = pneg %p114
    // Predicated region
    $region25: #{yolo_head_forward.1} parent=5 // pred_check
      _
    $region26: #{yolo_head_forward.1} parent=5 // pred_check_branch
      %117 = sbr.rel (%p114) target = $region28
    $region27: #{yolo_head_forward.1} parent=5 // pred_region
      %s118 = ssub.s32 %s8, 1
      %p119 = pneg %p29
      %p120 = pneg %p26
      %s121 = smul.u32 32, %s13
      %p122 = scmp.lt.s32.totalorder %s121, 63
      %s123 = scalar_select %p122, %s121, 63
      %s124 = smul.addr %s123, 8
      %s125 = scalar_lea.vmem %s1, %s124
      %p126 = pneg %p55
      %p127 = pneg %p52
      %p128 = pneg %p81
      %p129 = pneg %p78
      %s130 = smul.u32 32, %s13
      %p131 = scmp.lt.s32.totalorder %s130, 63
      %s132 = scalar_select %p131, %s130, 63
      %s133 = smul.addr %s132, 8
      %s134 = scalar_lea.vmem %s2, %s133
      %s135 = smul.u32 32, %s13
      %p136 = scmp.lt.s32.totalorder %s135, 63
      %s137 = scalar_select %p136, %s135, 63
      %s138 = smul.addr %s137, 8
      %s139 = scalar_lea.vmem %s1, %s138
      %s140 = smul.u32 32, %s13
      %s141 = smul.u32 32, %s13
      %p142 = scmp.lt.s32.totalorder %s141, 63
      %s143 = scalar_select %p142, %s141, 63
      %s144 = smul.addr %s143, 8
      %s145 = scalar_lea.vmem %s2, %s144
      %s146 = smul.u32 32, %s13
      %v147 = vld [vmem:[%s139] sm:$0xff]
      %v148 = vld [vmem:[%s139 + $0x8] sm:$0xff]
      %v149 = vld [vmem:[%s139 + $0x10] sm:$0xff]
      %v150 = vld [vmem:[%s139 + $0x18] sm:$0xff]
      %v151 = vld [vmem:[%s139 + $0x20] sm:$0xff]
      %v152 = vld [vmem:[%s139 + $0x28] sm:$0xff]
      %v153 = vld [vmem:[%s139 + $0x30] sm:$0xff]
      %v154 = vld [vmem:[%s139 + $0x38] sm:$0xff]
      %v155 = vld [vmem:[%s139 + $0x40] sm:$0xff]
      %v156 = vld [vmem:[%s139 + $0x48] sm:$0xff]
      %v157 = vld [vmem:[%s139 + $0x50] sm:$0xff]
      %v158 = vld [vmem:[%s139 + $0x58] sm:$0xff]
      %v159 = vld [vmem:[%s139 + $0x60] sm:$0xff]
      %v160 = vld [vmem:[%s139 + $0x68] sm:$0xff]
      %v161 = vld [vmem:[%s139 + $0x70] sm:$0xff]
      %v162 = vld [vmem:[%s139 + $0x78] sm:$0xff]
      %v163 = vld [vmem:[%s139 + $0x80] sm:$0xff]
      %v164 = vld [vmem:[%s139 + $0x88] sm:$0xff]
      %v165 = vld [vmem:[%s139 + $0x90] sm:$0xff]
      %v166 = vld [vmem:[%s139 + $0x98] sm:$0xff]
      %v167 = vld [vmem:[%s139 + $0xa0] sm:$0xff]
      %v168 = vld [vmem:[%s139 + $0xa8] sm:$0xff]
      %v169 = vld [vmem:[%s139 + $0xb0] sm:$0xff]
      %v170 = vld [vmem:[%s139 + $0xb8] sm:$0xff]
      %v171 = vld [vmem:[%s139 + $0xc0] sm:$0xff]
      %v172 = vld [vmem:[%s139 + $0xc8] sm:$0xff]
      %v173 = vld [vmem:[%s139 + $0xd0] sm:$0xff]
      %v174 = vld [vmem:[%s139 + $0xd8] sm:$0xff]
      %v175 = vld [vmem:[%s139 + $0xe0] sm:$0xff]
      %v176 = vld [vmem:[%s139 + $0xe8] sm:$0xff]
      %v177 = vld [vmem:[%s139 + $0xf0] sm:$0xff]
      %v178 = vld [vmem:[%s139 + $0xf8] sm:$0xff]
      %v179 = vld [vmem:[%s0] sm:$0xf]
      %vm180 = vcmp.gt.f32.partialorder %v179, 0.5
      %s181 = smul.u32 %s13, 256
      %v182 = vlaneseq
      %v183 = vshrl.u32 %v182, 7
      %v184 = vadd.s32 %v183, 8
      %v185 = vadd.s32 %v183, 16
      %v186 = vadd.s32 %v183, 24
      %v187 = vadd.s32 %v183, 32
      %v188 = vadd.s32 %v183, 40
      %v189 = vadd.s32 %v183, 48
      %v190 = vadd.s32 %v183, 56
      %v191 = vadd.s32 %v183, 64
      %v192 = vadd.s32 %v183, 72
      %v193 = vadd.s32 %v183, 80
      %v194 = vadd.s32 %v183, 88
      %v195 = vadd.s32 %v183, 96
      %v196 = vadd.s32 %v183, 104
      %v197 = vadd.s32 %v183, 112
      %v198 = vadd.s32 %v183, 120
      %v199 = vadd.s32 %v183, 128
      %v200 = vadd.s32 %v183, 136
      %v201 = vadd.s32 %v183, 144
      %v202 = vadd.s32 %v183, 152
      %v203 = vadd.s32 %v183, 160
      %v204 = vadd.s32 %v183, 168
      %v205 = vadd.s32 %v183, 176
      %v206 = vadd.s32 %v183, 184
      %v207 = vadd.s32 %v183, 192
      %v208 = vadd.s32 %v183, 200
      %v209 = vadd.s32 %v183, 208
      %v210 = vadd.s32 %v183, 216
      %v211 = vadd.s32 %v183, 224
      %v212 = vadd.s32 %v183, 232
      %v213 = vadd.s32 %v183, 240
      %v214 = vadd.s32 %v183, 248
      %v215 = vstv %s181
      %v216 = vadd.s32 %v183, %v215
      %v217 = vadd.s32 %v184, %v215
      %v218 = vadd.s32 %v185, %v215
      %v219 = vadd.s32 %v186, %v215
      %v220 = vadd.s32 %v187, %v215
      %v221 = vadd.s32 %v188, %v215
      %v222 = vadd.s32 %v189, %v215
      %v223 = vadd.s32 %v190, %v215
      %v224 = vadd.s32 %v191, %v215
      %v225 = vadd.s32 %v192, %v215
      %v226 = vadd.s32 %v193, %v215
      %v227 = vadd.s32 %v194, %v215
      %v228 = vadd.s32 %v195, %v215
      %v229 = vadd.s32 %v196, %v215
      %v230 = vadd.s32 %v197, %v215
      %v231 = vadd.s32 %v198, %v215
      %v232 = vadd.s32 %v199, %v215
      %v233 = vadd.s32 %v200, %v215
      %v234 = vadd.s32 %v201, %v215
      %v235 = vadd.s32 %v202, %v215
      %v236 = vadd.s32 %v203, %v215
      %v237 = vadd.s32 %v204, %v215
      %v238 = vadd.s32 %v205, %v215
      %v239 = vadd.s32 %v206, %v215
      %v240 = vadd.s32 %v207, %v215
      %v241 = vadd.s32 %v208, %v215
      %v242 = vadd.s32 %v209, %v215
      %v243 = vadd.s32 %v210, %v215
      %v244 = vadd.s32 %v211, %v215
      %v245 = vadd.s32 %v212, %v215
      %v246 = vadd.s32 %v213, %v215
      %v247 = vadd.s32 %v214, %v215
      %v248 = vcvt.s32.f32 %v216
      %v249 = vcvt.s32.f32 %v217
      %v250 = vcvt.s32.f32 %v218
      %v251 = vcvt.s32.f32 %v219
      %v252 = vcvt.s32.f32 %v220
      %v253 = vcvt.s32.f32 %v221
      %v254 = vcvt.s32.f32 %v222
      %v255 = vcvt.s32.f32 %v223
      %v256 = vcvt.s32.f32 %v224
      %v257 = vcvt.s32.f32 %v225
      %v258 = vcvt.s32.f32 %v226
      %v259 = vcvt.s32.f32 %v227
      %v260 = vcvt.s32.f32 %v228
      %v261 = vcvt.s32.f32 %v229
      %v262 = vcvt.s32.f32 %v230
      %v263 = vcvt.s32.f32 %v231
      %v264 = vcvt.s32.f32 %v232
      %v265 = vcvt.s32.f32 %v233
      %v266 = vcvt.s32.f32 %v234
      %v267 = vcvt.s32.f32 %v235
      %v268 = vcvt.s32.f32 %v236
      %v269 = vcvt.s32.f32 %v237
      %v270 = vcvt.s32.f32 %v238
      %v271 = vcvt.s32.f32 %v239
      %v272 = vcvt.s32.f32 %v240
      %v273 = vcvt.s32.f32 %v241
      %v274 = vcvt.s32.f32 %v242
      %v275 = vcvt.s32.f32 %v243
      %v276 = vcvt.s32.f32 %v244
      %v277 = vcvt.s32.f32 %v245
      %v278 = vcvt.s32.f32 %v246
      %v279 = vcvt.s32.f32 %v247
      %v280 = vadd.f32 %v248, 0.5
      %v281 = vadd.f32 %v249, 0.5
      %v282 = vadd.f32 %v250, 0.5
      %v283 = vadd.f32 %v251, 0.5
      %v284 = vadd.f32 %v252, 0.5
      %v285 = vadd.f32 %v253, 0.5
      %v286 = vadd.f32 %v254, 0.5
      %v287 = vadd.f32 %v255, 0.5
      %v288 = vadd.f32 %v256, 0.5
      %v289 = vadd.f32 %v257, 0.5
      %v290 = vadd.f32 %v258, 0.5
      %v291 = vadd.f32 %v259, 0.5
      %v292 = vadd.f32 %v260, 0.5
      %v293 = vadd.f32 %v261, 0.5
      %v294 = vadd.f32 %v262, 0.5
      %v295 = vadd.f32 %v263, 0.5
      %v296 = vadd.f32 %v264, 0.5
      %v297 = vadd.f32 %v265, 0.5
      %v298 = vadd.f32 %v266, 0.5
      %v299 = vadd.f32 %v267, 0.5
      %v300 = vadd.f32 %v268, 0.5
      %v301 = vadd.f32 %v269, 0.5
      %v302 = vadd.f32 %v270, 0.5
      %v303 = vadd.f32 %v271, 0.5
      %v304 = vadd.f32 %v272, 0.5
      %v305 = vadd.f32 %v273, 0.5
      %v306 = vadd.f32 %v274, 0.5
      %v307 = vadd.f32 %v275, 0.5
      %v308 = vadd.f32 %v276, 0.5
      %v309 = vadd.f32 %v277, 0.5
      %v310 = vadd.f32 %v278, 0.5
      %v311 = vadd.f32 %v279, 0.5
      %v312 = vmul.f32 %v280, 0.00390625
      %v313 = vmul.f32 %v281, 0.00390625
      %v314 = vmul.f32 %v282, 0.00390625
      %v315 = vmul.f32 %v283, 0.00390625
      %v316 = vmul.f32 %v284, 0.00390625
      %v317 = vmul.f32 %v285, 0.00390625
      %v318 = vmul.f32 %v286, 0.00390625
      %v319 = vmul.f32 %v287, 0.00390625
      %v320 = vmul.f32 %v288, 0.00390625
      %v321 = vmul.f32 %v289, 0.00390625
      %v322 = vmul.f32 %v290, 0.00390625
      %v323 = vmul.f32 %v291, 0.00390625
      %v324 = vmul.f32 %v292, 0.00390625
      %v325 = vmul.f32 %v293, 0.00390625
      %v326 = vmul.f32 %v294, 0.00390625
      %v327 = vmul.f32 %v295, 0.00390625
      %v328 = vmul.f32 %v296, 0.00390625
      %v329 = vmul.f32 %v297, 0.00390625
      %v330 = vmul.f32 %v298, 0.00390625
      %v331 = vmul.f32 %v299, 0.00390625
      %v332 = vmul.f32 %v300, 0.00390625
      %v333 = vmul.f32 %v301, 0.00390625
      %v334 = vmul.f32 %v302, 0.00390625
      %v335 = vmul.f32 %v303, 0.00390625
      %v336 = vmul.f32 %v304, 0.00390625
      %v337 = vmul.f32 %v305, 0.00390625
      %v338 = vmul.f32 %v306, 0.00390625
      %v339 = vmul.f32 %v307, 0.00390625
      %v340 = vmul.f32 %v308, 0.00390625
      %v341 = vmul.f32 %v309, 0.00390625
      %v342 = vmul.f32 %v310, 0.00390625
      %v343 = vmul.f32 %v311, 0.00390625
      %v344 = vfloor.f32 %v312
      %v345 = vfloor.f32 %v313
      %v346 = vfloor.f32 %v314
      %v347 = vfloor.f32 %v315
      %v348 = vfloor.f32 %v316
      %v349 = vfloor.f32 %v317
      %v350 = vfloor.f32 %v318
      %v351 = vfloor.f32 %v319
      %v352 = vfloor.f32 %v320
      %v353 = vfloor.f32 %v321
      %v354 = vfloor.f32 %v322
      %v355 = vfloor.f32 %v323
      %v356 = vfloor.f32 %v324
      %v357 = vfloor.f32 %v325
      %v358 = vfloor.f32 %v326
      %v359 = vfloor.f32 %v327
      %v360 = vfloor.f32 %v328
      %v361 = vfloor.f32 %v329
      %v362 = vfloor.f32 %v330
      %v363 = vfloor.f32 %v331
      %v364 = vfloor.f32 %v332
      %v365 = vfloor.f32 %v333
      %v366 = vfloor.f32 %v334
      %v367 = vfloor.f32 %v335
      %v368 = vfloor.f32 %v336
      %v369 = vfloor.f32 %v337
      %v370 = vfloor.f32 %v338
      %v371 = vfloor.f32 %v339
      %v372 = vfloor.f32 %v340
      %v373 = vfloor.f32 %v341
      %v374 = vfloor.f32 %v342
      %v375 = vfloor.f32 %v343
      %v376 = vmul.f32 %v344, 256.0
      %v377 = vmul.f32 %v345, 256.0
      %v378 = vmul.f32 %v346, 256.0
      %v379 = vmul.f32 %v347, 256.0
      %v380 = vmul.f32 %v348, 256.0
      %v381 = vmul.f32 %v349, 256.0
      %v382 = vmul.f32 %v350, 256.0
      %v383 = vmul.f32 %v351, 256.0
      %v384 = vmul.f32 %v352, 256.0
      %v385 = vmul.f32 %v353, 256.0
      %v386 = vmul.f32 %v354, 256.0
      %v387 = vmul.f32 %v355, 256.0
      %v388 = vmul.f32 %v356, 256.0
      %v389 = vmul.f32 %v357, 256.0
      %v390 = vmul.f32 %v358, 256.0
      %v391 = vmul.f32 %v359, 256.0
      %v392 = vmul.f32 %v360, 256.0
      %v393 = vmul.f32 %v361, 256.0
      %v394 = vmul.f32 %v362, 256.0
      %v395 = vmul.f32 %v363, 256.0
      %v396 = vmul.f32 %v364, 256.0
      %v397 = vmul.f32 %v365, 256.0
      %v398 = vmul.f32 %v366, 256.0
      %v399 = vmul.f32 %v367, 256.0
      %v400 = vmul.f32 %v368, 256.0
      %v401 = vmul.f32 %v369, 256.0
      %v402 = vmul.f32 %v370, 256.0
      %v403 = vmul.f32 %v371, 256.0
      %v404 = vmul.f32 %v372, 256.0
      %v405 = vmul.f32 %v373, 256.0
      %v406 = vmul.f32 %v374, 256.0
      %v407 = vmul.f32 %v375, 256.0
      %v408 = vsub.f32 %v248, %v376
      %v409 = vsub.f32 %v249, %v377
      %v410 = vsub.f32 %v250, %v378
      %v411 = vsub.f32 %v251, %v379
      %v412 = vsub.f32 %v252, %v380
      %v413 = vsub.f32 %v253, %v381
      %v414 = vsub.f32 %v254, %v382
      %v415 = vsub.f32 %v255, %v383
      %v416 = vsub.f32 %v256, %v384
      %v417 = vsub.f32 %v257, %v385
      %v418 = vsub.f32 %v258, %v386
      %v419 = vsub.f32 %v259, %v387
      %v420 = vsub.f32 %v260, %v388
      %v421 = vsub.f32 %v261, %v389
      %v422 = vsub.f32 %v262, %v390
      %v423 = vsub.f32 %v263, %v391
      %v424 = vsub.f32 %v264, %v392
      %v425 = vsub.f32 %v265, %v393
      %v426 = vsub.f32 %v266, %v394
      %v427 = vsub.f32 %v267, %v395
      %v428 = vsub.f32 %v268, %v396
      %v429 = vsub.f32 %v269, %v397
      %v430 = vsub.f32 %v270, %v398
      %v431 = vsub.f32 %v271, %v399
      %v432 = vsub.f32 %v272, %v400
      %v433 = vsub.f32 %v273, %v401
      %v434 = vsub.f32 %v274, %v402
      %v435 = vsub.f32 %v275, %v403
      %v436 = vsub.f32 %v276, %v404
      %v437 = vsub.f32 %v277, %v405
      %v438 = vsub.f32 %v278, %v406
      %v439 = vsub.f32 %v279, %v407
      %v440 = vadd.f32 %v408, 0.5
      %v441 = vadd.f32 %v409, 0.5
      %v442 = vadd.f32 %v410, 0.5
      %v443 = vadd.f32 %v411, 0.5
      %v444 = vadd.f32 %v412, 0.5
      %v445 = vadd.f32 %v413, 0.5
      %v446 = vadd.f32 %v414, 0.5
      %v447 = vadd.f32 %v415, 0.5
      %v448 = vadd.f32 %v416, 0.5
      %v449 = vadd.f32 %v417, 0.5
      %v450 = vadd.f32 %v418, 0.5
      %v451 = vadd.f32 %v419, 0.5
      %v452 = vadd.f32 %v420, 0.5
      %v453 = vadd.f32 %v421, 0.5
      %v454 = vadd.f32 %v422, 0.5
      %v455 = vadd.f32 %v423, 0.5
      %v456 = vadd.f32 %v424, 0.5
      %v457 = vadd.f32 %v425, 0.5
      %v458 = vadd.f32 %v426, 0.5
      %v459 = vadd.f32 %v427, 0.5
      %v460 = vadd.f32 %v428, 0.5
      %v461 = vadd.f32 %v429, 0.5
      %v462 = vadd.f32 %v430, 0.5
      %v463 = vadd.f32 %v431, 0.5
      %v464 = vadd.f32 %v432, 0.5
      %v465 = vadd.f32 %v433, 0.5
      %v466 = vadd.f32 %v434, 0.5
      %v467 = vadd.f32 %v435, 0.5
      %v468 = vadd.f32 %v436, 0.5
      %v469 = vadd.f32 %v437, 0.5
      %v470 = vadd.f32 %v438, 0.5
      %v471 = vadd.f32 %v439, 0.5
      %v472 = vmul.f32 %v440, 0.0625
      %v473 = vmul.f32 %v441, 0.0625
      %v474 = vmul.f32 %v442, 0.0625
      %v475 = vmul.f32 %v443, 0.0625
      %v476 = vmul.f32 %v444, 0.0625
      %v477 = vmul.f32 %v445, 0.0625
      %v478 = vmul.f32 %v446, 0.0625
      %v479 = vmul.f32 %v447, 0.0625
      %v480 = vmul.f32 %v448, 0.0625
      %v481 = vmul.f32 %v449, 0.0625
      %v482 = vmul.f32 %v450, 0.0625
      %v483 = vmul.f32 %v451, 0.0625
      %v484 = vmul.f32 %v452, 0.0625
      %v485 = vmul.f32 %v453, 0.0625
      %v486 = vmul.f32 %v454, 0.0625
      %v487 = vmul.f32 %v455, 0.0625
      %v488 = vmul.f32 %v456, 0.0625
      %v489 = vmul.f32 %v457, 0.0625
      %v490 = vmul.f32 %v458, 0.0625
      %v491 = vmul.f32 %v459, 0.0625
      %v492 = vmul.f32 %v460, 0.0625
      %v493 = vmul.f32 %v461, 0.0625
      %v494 = vmul.f32 %v462, 0.0625
      %v495 = vmul.f32 %v463, 0.0625
      %v496 = vmul.f32 %v464, 0.0625
      %v497 = vmul.f32 %v465, 0.0625
      %v498 = vmul.f32 %v466, 0.0625
      %v499 = vmul.f32 %v467, 0.0625
      %v500 = vmul.f32 %v468, 0.0625
      %v501 = vmul.f32 %v469, 0.0625
      %v502 = vmul.f32 %v470, 0.0625
      %v503 = vmul.f32 %v471, 0.0625
      %v504 = vfloor.f32 %v472
      %v505 = vfloor.f32 %v473
      %v506 = vfloor.f32 %v474
      %v507 = vfloor.f32 %v475
      %v508 = vfloor.f32 %v476
      %v509 = vfloor.f32 %v477
      %v510 = vfloor.f32 %v478
      %v511 = vfloor.f32 %v479
      %v512 = vfloor.f32 %v480
      %v513 = vfloor.f32 %v481
      %v514 = vfloor.f32 %v482
      %v515 = vfloor.f32 %v483
      %v516 = vfloor.f32 %v484
      %v517 = vfloor.f32 %v485
      %v518 = vfloor.f32 %v486
      %v519 = vfloor.f32 %v487
      %v520 = vfloor.f32 %v488
      %v521 = vfloor.f32 %v489
      %v522 = vfloor.f32 %v490
      %v523 = vfloor.f32 %v491
      %v524 = vfloor.f32 %v492
      %v525 = vfloor.f32 %v493
      %v526 = vfloor.f32 %v494
      %v527 = vfloor.f32 %v495
      %v528 = vfloor.f32 %v496
      %v529 = vfloor.f32 %v497
      %v530 = vfloor.f32 %v498
      %v531 = vfloor.f32 %v499
      %v532 = vfloor.f32 %v500
      %v533 = vfloor.f32 %v501
      %v534 = vfloor.f32 %v502
      %v535 = vfloor.f32 %v503
      %v536 = vmul.f32 %v504, 16.0
      %v537 = vmul.f32 %v505, 16.0
      %v538 = vmul.f32 %v506, 16.0
      %v539 = vmul.f32 %v507, 16.0
      %v540 = vmul.f32 %v508, 16.0
      %v541 = vmul.f32 %v509, 16.0
      %v542 = vmul.f32 %v510, 16.0
      %v543 = vmul.f32 %v511, 16.0
      %v544 = vmul.f32 %v512, 16.0
      %v545 = vmul.f32 %v513, 16.0
      %v546 = vmul.f32 %v514, 16.0
      %v547 = vmul.f32 %v515, 16.0
      %v548 = vmul.f32 %v516, 16.0
      %v549 = vmul.f32 %v517, 16.0
      %v550 = vmul.f32 %v518, 16.0
      %v551 = vmul.f32 %v519, 16.0
      %v552 = vmul.f32 %v520, 16.0
      %v553 = vmul.f32 %v521, 16.0
      %v554 = vmul.f32 %v522, 16.0
      %v555 = vmul.f32 %v523, 16.0
      %v556 = vmul.f32 %v524, 16.0
      %v557 = vmul.f32 %v525, 16.0
      %v558 = vmul.f32 %v526, 16.0
      %v559 = vmul.f32 %v527, 16.0
      %v560 = vmul.f32 %v528, 16.0
      %v561 = vmul.f32 %v529, 16.0
      %v562 = vmul.f32 %v530, 16.0
      %v563 = vmul.f32 %v531, 16.0
      %v564 = vmul.f32 %v532, 16.0
      %v565 = vmul.f32 %v533, 16.0
      %v566 = vmul.f32 %v534, 16.0
      %v567 = vmul.f32 %v535, 16.0
      %v568 = vsub.f32 %v408, %v536
      %v569 = vsub.f32 %v409, %v537
      %v570 = vsub.f32 %v410, %v538
      %v571 = vsub.f32 %v411, %v539
      %v572 = vsub.f32 %v412, %v540
      %v573 = vsub.f32 %v413, %v541
      %v574 = vsub.f32 %v414, %v542
      %v575 = vsub.f32 %v415, %v543
      %v576 = vsub.f32 %v416, %v544
      %v577 = vsub.f32 %v417, %v545
      %v578 = vsub.f32 %v418, %v546
      %v579 = vsub.f32 %v419, %v547
      %v580 = vsub.f32 %v420, %v548
      %v581 = vsub.f32 %v421, %v549
      %v582 = vsub.f32 %v422, %v550
      %v583 = vsub.f32 %v423, %v551
      %v584 = vsub.f32 %v424, %v552
      %v585 = vsub.f32 %v425, %v553
      %v586 = vsub.f32 %v426, %v554
      %v587 = vsub.f32 %v427, %v555
      %v588 = vsub.f32 %v428, %v556
      %v589 = vsub.f32 %v429, %v557
      %v590 = vsub.f32 %v430, %v558
      %v591 = vsub.f32 %v431, %v559
      %v592 = vsub.f32 %v432, %v560
      %v593 = vsub.f32 %v433, %v561
      %v594 = vsub.f32 %v434, %v562
      %v595 = vsub.f32 %v435, %v563
      %v596 = vsub.f32 %v436, %v564
      %v597 = vsub.f32 %v437, %v565
      %v598 = vsub.f32 %v438, %v566
      %v599 = vsub.f32 %v439, %v567
      %v600 = vlaneseq
      %v601 = vshrl.u32 %v600, 7
      %v602 = vsub.s32 2, %v601
      %v603 = vrot.slane %v179, %v602
      %v604 = vmul.f32 %v603, %v504
      %v605 = vmul.f32 %v603, %v505
      %v606 = vmul.f32 %v603, %v506
      %v607 = vmul.f32 %v603, %v507
      %v608 = vmul.f32 %v603, %v508
      %v609 = vmul.f32 %v603, %v509
      %v610 = vmul.f32 %v603, %v510
      %v611 = vmul.f32 %v603, %v511
      %v612 = vmul.f32 %v603, %v512
      %v613 = vmul.f32 %v603, %v513
      %v614 = vmul.f32 %v603, %v514
      %v615 = vmul.f32 %v603, %v515
      %v616 = vmul.f32 %v603, %v516
      %v617 = vmul.f32 %v603, %v517
      %v618 = vmul.f32 %v603, %v518
      %v619 = vmul.f32 %v603, %v519
      %v620 = vmul.f32 %v603, %v520
      %v621 = vmul.f32 %v603, %v521
      %v622 = vmul.f32 %v603, %v522
      %v623 = vmul.f32 %v603, %v523
      %v624 = vmul.f32 %v603, %v524
      %v625 = vmul.f32 %v603, %v525
      %v626 = vmul.f32 %v603, %v526
      %v627 = vmul.f32 %v603, %v527
      %v628 = vmul.f32 %v603, %v528
      %v629 = vmul.f32 %v603, %v529
      %v630 = vmul.f32 %v603, %v530
      %v631 = vmul.f32 %v603, %v531
      %v632 = vmul.f32 %v603, %v532
      %v633 = vmul.f32 %v603, %v533
      %v634 = vmul.f32 %v603, %v534
      %v635 = vmul.f32 %v603, %v535
      %v636 = vlaneseq
      %v637 = vshrl.u32 %v636, 7
      %v638 = vsub.s32 3, %v637
      %v639 = vrot.slane %v179, %v638
      %v640 = vmul.f32 %v639, %v568
      %v641 = vmul.f32 %v639, %v569
      %v642 = vmul.f32 %v639, %v570
      %v643 = vmul.f32 %v639, %v571
      %v644 = vmul.f32 %v639, %v572
      %v645 = vmul.f32 %v639, %v573
      %v646 = vmul.f32 %v639, %v574
      %v647 = vmul.f32 %v639, %v575
      %v648 = vmul.f32 %v639, %v576
      %v649 = vmul.f32 %v639, %v577
      %v650 = vmul.f32 %v639, %v578
      %v651 = vmul.f32 %v639, %v579
      %v652 = vmul.f32 %v639, %v580
      %v653 = vmul.f32 %v639, %v581
      %v654 = vmul.f32 %v639, %v582
      %v655 = vmul.f32 %v639, %v583
      %v656 = vmul.f32 %v639, %v584
      %v657 = vmul.f32 %v639, %v585
      %v658 = vmul.f32 %v639, %v586
      %v659 = vmul.f32 %v639, %v587
      %v660 = vmul.f32 %v639, %v588
      %v661 = vmul.f32 %v639, %v589
      %v662 = vmul.f32 %v639, %v590
      %v663 = vmul.f32 %v639, %v591
      %v664 = vmul.f32 %v639, %v592
      %v665 = vmul.f32 %v639, %v593
      %v666 = vmul.f32 %v639, %v594
      %v667 = vmul.f32 %v639, %v595
      %v668 = vmul.f32 %v639, %v596
      %v669 = vmul.f32 %v639, %v597
      %v670 = vmul.f32 %v639, %v598
      %v671 = vmul.f32 %v639, %v599
      %v672 = vadd.f32 %v604, %v640
      %v673 = vadd.f32 %v605, %v641
      %v674 = vadd.f32 %v606, %v642
      %v675 = vadd.f32 %v607, %v643
      %v676 = vadd.f32 %v608, %v644
      %v677 = vadd.f32 %v609, %v645
      %v678 = vadd.f32 %v610, %v646
      %v679 = vadd.f32 %v611, %v647
      %v680 = vadd.f32 %v612, %v648
      %v681 = vadd.f32 %v613, %v649
      %v682 = vadd.f32 %v614, %v650
      %v683 = vadd.f32 %v615, %v651
      %v684 = vadd.f32 %v616, %v652
      %v685 = vadd.f32 %v617, %v653
      %v686 = vadd.f32 %v618, %v654
      %v687 = vadd.f32 %v619, %v655
      %v688 = vadd.f32 %v620, %v656
      %v689 = vadd.f32 %v621, %v657
      %v690 = vadd.f32 %v622, %v658
      %v691 = vadd.f32 %v623, %v659
      %v692 = vadd.f32 %v624, %v660
      %v693 = vadd.f32 %v625, %v661
      %v694 = vadd.f32 %v626, %v662
      %v695 = vadd.f32 %v627, %v663
      %v696 = vadd.f32 %v628, %v664
      %v697 = vadd.f32 %v629, %v665
      %v698 = vadd.f32 %v630, %v666
      %v699 = vadd.f32 %v631, %v667
      %v700 = vadd.f32 %v632, %v668
      %v701 = vadd.f32 %v633, %v669
      %v702 = vadd.f32 %v634, %v670
      %v703 = vadd.f32 %v635, %v671
      %v704 = vsub.f32 0.0, %v147
      %v705 = vsub.f32 0.0, %v148
      %v706 = vsub.f32 0.0, %v149
      %v707 = vsub.f32 0.0, %v150
      %v708 = vsub.f32 0.0, %v151
      %v709 = vsub.f32 0.0, %v152
      %v710 = vsub.f32 0.0, %v153
      %v711 = vsub.f32 0.0, %v154
      %v712 = vsub.f32 0.0, %v155
      %v713 = vsub.f32 0.0, %v156
      %v714 = vsub.f32 0.0, %v157
      %v715 = vsub.f32 0.0, %v158
      %v716 = vsub.f32 0.0, %v159
      %v717 = vsub.f32 0.0, %v160
      %v718 = vsub.f32 0.0, %v161
      %v719 = vsub.f32 0.0, %v162
      %v720 = vsub.f32 0.0, %v163
      %v721 = vsub.f32 0.0, %v164
      %v722 = vsub.f32 0.0, %v165
      %v723 = vsub.f32 0.0, %v166
      %v724 = vsub.f32 0.0, %v167
      %v725 = vsub.f32 0.0, %v168
      %v726 = vsub.f32 0.0, %v169
      %v727 = vsub.f32 0.0, %v170
      %v728 = vsub.f32 0.0, %v171
      %v729 = vsub.f32 0.0, %v172
      %v730 = vsub.f32 0.0, %v173
      %v731 = vsub.f32 0.0, %v174
      %v732 = vsub.f32 0.0, %v175
      %v733 = vsub.f32 0.0, %v176
      %v734 = vsub.f32 0.0, %v177
      %v735 = vsub.f32 0.0, %v178
      %v736 = vsel %vm180, 1, 0
      %v737 = vlaneseq
      %v738 = vshrl.u32 %v737, 7
      %v739 = vsub.s32 1, %v738
      %v740 = vrot.slane %v736, %v739
      %vm741 = vcmp.eq.s32.totalorder %v740, 1
      %v742 = vsel %vm741, %v147, %v704
      %v743 = vsel %vm741, %v148, %v705
      %v744 = vsel %vm741, %v149, %v706
      %v745 = vsel %vm741, %v150, %v707
      %v746 = vsel %vm741, %v151, %v708
      %v747 = vsel %vm741, %v152, %v709
      %v748 = vsel %vm741, %v153, %v710
      %v749 = vsel %vm741, %v154, %v711
      %v750 = vsel %vm741, %v155, %v712
      %v751 = vsel %vm741, %v156, %v713
      %v752 = vsel %vm741, %v157, %v714
      %v753 = vsel %vm741, %v158, %v715
      %v754 = vsel %vm741, %v159, %v716
      %v755 = vsel %vm741, %v160, %v717
      %v756 = vsel %vm741, %v161, %v718
      %v757 = vsel %vm741, %v162, %v719
      %v758 = vsel %vm741, %v163, %v720
      %v759 = vsel %vm741, %v164, %v721
      %v760 = vsel %vm741, %v165, %v722
      %v761 = vsel %vm741, %v166, %v723
      %v762 = vsel %vm741, %v167, %v724
      %v763 = vsel %vm741, %v168, %v725
      %v764 = vsel %vm741, %v169, %v726
      %v765 = vsel %vm741, %v170, %v727
      %v766 = vsel %vm741, %v171, %v728
      %v767 = vsel %vm741, %v172, %v729
      %v768 = vsel %vm741, %v173, %v730
      %v769 = vsel %vm741, %v174, %v731
      %v770 = vsel %vm741, %v175, %v732
      %v771 = vsel %vm741, %v176, %v733
      %v772 = vsel %vm741, %v177, %v734
      %v773 = vsel %vm741, %v178, %v735
      %v774 = vmul.f32 %v742, 1.442695
      %v775 = vpow.pop %v774
      %v776 = vmul.f32 %v743, 1.442695
      %v777 = vpow.pop %v776
      %v778 = vmul.f32 %v744, 1.442695
      %v779 = vpow.pop %v778
      %v780 = vmul.f32 %v745, 1.442695
      %v781 = vpow.pop %v780
      %v782 = vmul.f32 %v746, 1.442695
      %v783 = vpow.pop %v782
      %v784 = vmul.f32 %v747, 1.442695
      %v785 = vpow.pop %v784
      %v786 = vmul.f32 %v748, 1.442695
      %v787 = vpow.pop %v786
      %v788 = vmul.f32 %v749, 1.442695
      %v789 = vpow.pop %v788
      %v790 = vmul.f32 %v750, 1.442695
      %v791 = vpow.pop %v790
      %v792 = vmul.f32 %v751, 1.442695
      %v793 = vpow.pop %v792
      %v794 = vmul.f32 %v752, 1.442695
      %v795 = vpow.pop %v794
      %v796 = vmul.f32 %v753, 1.442695
      %v797 = vpow.pop %v796
      %v798 = vmul.f32 %v754, 1.442695
      %v799 = vpow.pop %v798
      %v800 = vmul.f32 %v755, 1.442695
      %v801 = vpow.pop %v800
      %v802 = vmul.f32 %v756, 1.442695
      %v803 = vpow.pop %v802
      %v804 = vmul.f32 %v757, 1.442695
      %v805 = vpow.pop %v804
      %v806 = vmul.f32 %v758, 1.442695
      %v807 = vpow.pop %v806
      %v808 = vmul.f32 %v759, 1.442695
      %v809 = vpow.pop %v808
      %v810 = vmul.f32 %v760, 1.442695
      %v811 = vpow.pop %v810
      %v812 = vmul.f32 %v761, 1.442695
      %v813 = vpow.pop %v812
      %v814 = vmul.f32 %v762, 1.442695
      %v815 = vpow.pop %v814
      %v816 = vmul.f32 %v763, 1.442695
      %v817 = vpow.pop %v816
      %v818 = vmul.f32 %v764, 1.442695
      %v819 = vpow.pop %v818
      %v820 = vmul.f32 %v765, 1.442695
      %v821 = vpow.pop %v820
      %v822 = vmul.f32 %v766, 1.442695
      %v823 = vpow.pop %v822
      %v824 = vmul.f32 %v767, 1.442695
      %v825 = vpow.pop %v824
      %v826 = vmul.f32 %v768, 1.442695
      %v827 = vpow.pop %v826
      %v828 = vmul.f32 %v769, 1.442695
      %v829 = vpow.pop %v828
      %v830 = vmul.f32 %v770, 1.442695
      %v831 = vpow.pop %v830
      %v832 = vmul.f32 %v771, 1.442695
      %v833 = vpow.pop %v832
      %v834 = vmul.f32 %v772, 1.442695
      %v835 = vpow.pop %v834
      %v836 = vmul.f32 %v773, 1.442695
      %v837 = vpow.pop %v836
      %v838 = vadd.f32 %v775, 1.0
      %v839 = vadd.f32 %v777, 1.0
      %v840 = vadd.f32 %v779, 1.0
      %v841 = vadd.f32 %v781, 1.0
      %v842 = vadd.f32 %v783, 1.0
      %v843 = vadd.f32 %v785, 1.0
      %v844 = vadd.f32 %v787, 1.0
      %v845 = vadd.f32 %v789, 1.0
      %v846 = vadd.f32 %v791, 1.0
      %v847 = vadd.f32 %v793, 1.0
      %v848 = vadd.f32 %v795, 1.0
      %v849 = vadd.f32 %v797, 1.0
      %v850 = vadd.f32 %v799, 1.0
      %v851 = vadd.f32 %v801, 1.0
      %v852 = vadd.f32 %v803, 1.0
      %v853 = vadd.f32 %v805, 1.0
      %v854 = vadd.f32 %v807, 1.0
      %v855 = vadd.f32 %v809, 1.0
      %v856 = vadd.f32 %v811, 1.0
      %v857 = vadd.f32 %v813, 1.0
      %v858 = vadd.f32 %v815, 1.0
      %v859 = vadd.f32 %v817, 1.0
      %v860 = vadd.f32 %v819, 1.0
      %v861 = vadd.f32 %v821, 1.0
      %v862 = vadd.f32 %v823, 1.0
      %v863 = vadd.f32 %v825, 1.0
      %v864 = vadd.f32 %v827, 1.0
      %v865 = vadd.f32 %v829, 1.0
      %v866 = vadd.f32 %v831, 1.0
      %v867 = vadd.f32 %v833, 1.0
      %v868 = vadd.f32 %v835, 1.0
      %v869 = vadd.f32 %v837, 1.0
      %v870 = vrcp.pop %v838
      %v871 = vrcp.pop %v839
      %v872 = vrcp.pop %v840
      %v873 = vrcp.pop %v841
      %v874 = vrcp.pop %v842
      %v875 = vrcp.pop %v843
      %v876 = vrcp.pop %v844
      %v877 = vrcp.pop %v845
      %v878 = vrcp.pop %v846
      %v879 = vrcp.pop %v847
      %v880 = vrcp.pop %v848
      %v881 = vrcp.pop %v849
      %v882 = vrcp.pop %v850
      %v883 = vrcp.pop %v851
      %v884 = vrcp.pop %v852
      %v885 = vrcp.pop %v853
      %v886 = vrcp.pop %v854
      %v887 = vrcp.pop %v855
      %v888 = vrcp.pop %v856
      %v889 = vrcp.pop %v857
      %v890 = vrcp.pop %v858
      %v891 = vrcp.pop %v859
      %v892 = vrcp.pop %v860
      %v893 = vrcp.pop %v861
      %v894 = vrcp.pop %v862
      %v895 = vrcp.pop %v863
      %v896 = vrcp.pop %v864
      %v897 = vrcp.pop %v865
      %v898 = vrcp.pop %v866
      %v899 = vrcp.pop %v867
      %v900 = vrcp.pop %v868
      %v901 = vrcp.pop %v869
      %v902 = vsel %vm741, %v775, %v870
      %v903 = vsel %vm741, %v777, %v871
      %v904 = vsel %vm741, %v779, %v872
      %v905 = vsel %vm741, %v781, %v873
      %v906 = vsel %vm741, %v783, %v874
      %v907 = vsel %vm741, %v785, %v875
      %v908 = vsel %vm741, %v787, %v876
      %v909 = vsel %vm741, %v789, %v877
      %v910 = vsel %vm741, %v791, %v878
      %v911 = vsel %vm741, %v793, %v879
      %v912 = vsel %vm741, %v795, %v880
      %v913 = vsel %vm741, %v797, %v881
      %v914 = vsel %vm741, %v799, %v882
      %v915 = vsel %vm741, %v801, %v883
      %v916 = vsel %vm741, %v803, %v884
      %v917 = vsel %vm741, %v805, %v885
      %v918 = vsel %vm741, %v807, %v886
      %v919 = vsel %vm741, %v809, %v887
      %v920 = vsel %vm741, %v811, %v888
      %v921 = vsel %vm741, %v813, %v889
      %v922 = vsel %vm741, %v815, %v890
      %v923 = vsel %vm741, %v817, %v891
      %v924 = vsel %vm741, %v819, %v892
      %v925 = vsel %vm741, %v821, %v893
      %v926 = vsel %vm741, %v823, %v894
      %v927 = vsel %vm741, %v825, %v895
      %v928 = vsel %vm741, %v827, %v896
      %v929 = vsel %vm741, %v829, %v897
      %v930 = vsel %vm741, %v831, %v898
      %v931 = vsel %vm741, %v833, %v899
      %v932 = vsel %vm741, %v835, %v900
      %v933 = vsel %vm741, %v837, %v901
      %v934 = vadd.f32 %v902, %v672
      %v935 = vadd.f32 %v903, %v673
      %v936 = vadd.f32 %v904, %v674
      %v937 = vadd.f32 %v905, %v675
      %v938 = vadd.f32 %v906, %v676
      %v939 = vadd.f32 %v907, %v677
      %v940 = vadd.f32 %v908, %v678
      %v941 = vadd.f32 %v909, %v679
      %v942 = vadd.f32 %v910, %v680
      %v943 = vadd.f32 %v911, %v681
      %v944 = vadd.f32 %v912, %v682
      %v945 = vadd.f32 %v913, %v683
      %v946 = vadd.f32 %v914, %v684
      %v947 = vadd.f32 %v915, %v685
      %v948 = vadd.f32 %v916, %v686
      %v949 = vadd.f32 %v917, %v687
      %v950 = vadd.f32 %v918, %v688
      %v951 = vadd.f32 %v919, %v689
      %v952 = vadd.f32 %v920, %v690
      %v953 = vadd.f32 %v921, %v691
      %v954 = vadd.f32 %v922, %v692
      %v955 = vadd.f32 %v923, %v693
      %v956 = vadd.f32 %v924, %v694
      %v957 = vadd.f32 %v925, %v695
      %v958 = vadd.f32 %v926, %v696
      %v959 = vadd.f32 %v927, %v697
      %v960 = vadd.f32 %v928, %v698
      %v961 = vadd.f32 %v929, %v699
      %v962 = vadd.f32 %v930, %v700
      %v963 = vadd.f32 %v931, %v701
      %v964 = vadd.f32 %v932, %v702
      %v965 = vadd.f32 %v933, %v703
      %v966 = vlaneseq
      %v967 = vshrl.u32 %v966, 7
      %v968 = vsub.s32 0, %v967
      %v969 = vrot.slane %v179, %v968
      %v970 = vmul.f32 %v934, %v969
      %v971 = vmul.f32 %v935, %v969
      %v972 = vmul.f32 %v936, %v969
      %v973 = vmul.f32 %v937, %v969
      %v974 = vmul.f32 %v938, %v969
      %v975 = vmul.f32 %v939, %v969
      %v976 = vmul.f32 %v940, %v969
      %v977 = vmul.f32 %v941, %v969
      %v978 = vmul.f32 %v942, %v969
      %v979 = vmul.f32 %v943, %v969
      %v980 = vmul.f32 %v944, %v969
      %v981 = vmul.f32 %v945, %v969
      %v982 = vmul.f32 %v946, %v969
      %v983 = vmul.f32 %v947, %v969
      %v984 = vmul.f32 %v948, %v969
      %v985 = vmul.f32 %v949, %v969
      %v986 = vmul.f32 %v950, %v969
      %v987 = vmul.f32 %v951, %v969
      %v988 = vmul.f32 %v952, %v969
      %v989 = vmul.f32 %v953, %v969
      %v990 = vmul.f32 %v954, %v969
      %v991 = vmul.f32 %v955, %v969
      %v992 = vmul.f32 %v956, %v969
      %v993 = vmul.f32 %v957, %v969
      %v994 = vmul.f32 %v958, %v969
      %v995 = vmul.f32 %v959, %v969
      %v996 = vmul.f32 %v960, %v969
      %v997 = vmul.f32 %v961, %v969
      %v998 = vmul.f32 %v962, %v969
      %v999 = vmul.f32 %v963, %v969
      %v1000 = vmul.f32 %v964, %v969
      %v1001 = vmul.f32 %v965, %v969
      %vm1002 = vcmask 220160
      %1003 = vst.msk [vmem:[%s145] sm:$0xff] %vm1002, %v970
      %1004 = vst.msk [vmem:[%s145 + $0x8] sm:$0xff] %vm1002, %v971
      %1005 = vst.msk [vmem:[%s145 + $0x10] sm:$0xff] %vm1002, %v972
      %1006 = vst.msk [vmem:[%s145 + $0x18] sm:$0xff] %vm1002, %v973
      %1007 = vst.msk [vmem:[%s145 + $0x20] sm:$0xff] %vm1002, %v974
      %1008 = vst.msk [vmem:[%s145 + $0x28] sm:$0xff] %vm1002, %v975
      %1009 = vst.msk [vmem:[%s145 + $0x30] sm:$0xff] %vm1002, %v976
      %1010 = vst.msk [vmem:[%s145 + $0x38] sm:$0xff] %vm1002, %v977
      %1011 = vst.msk [vmem:[%s145 + $0x40] sm:$0xff] %vm1002, %v978
      %1012 = vst.msk [vmem:[%s145 + $0x48] sm:$0xff] %vm1002, %v979
      %1013 = vst.msk [vmem:[%s145 + $0x50] sm:$0xff] %vm1002, %v980
      %1014 = vst.msk [vmem:[%s145 + $0x58] sm:$0xff] %vm1002, %v981
      %1015 = vst.msk [vmem:[%s145 + $0x60] sm:$0xff] %vm1002, %v982
      %1016 = vst.msk [vmem:[%s145 + $0x68] sm:$0xff] %vm1002, %v983
      %1017 = vst.msk [vmem:[%s145 + $0x70] sm:$0xff] %vm1002, %v984
      %1018 = vst.msk [vmem:[%s145 + $0x78] sm:$0xff] %vm1002, %v985
      %1019 = vst.msk [vmem:[%s145 + $0x80] sm:$0xff] %vm1002, %v986
      %1020 = vst.msk [vmem:[%s145 + $0x88] sm:$0xff] %vm1002, %v987
      %1021 = vst.msk [vmem:[%s145 + $0x90] sm:$0xff] %vm1002, %v988
      %1022 = vst.msk [vmem:[%s145 + $0x98] sm:$0xff] %vm1002, %v989
      %1023 = vst.msk [vmem:[%s145 + $0xa0] sm:$0xff] %vm1002, %v990
      %1024 = vst.msk [vmem:[%s145 + $0xa8] sm:$0xff] %vm1002, %v991
      %1025 = vst.msk [vmem:[%s145 + $0xb0] sm:$0xff] %vm1002, %v992
      %1026 = vst.msk [vmem:[%s145 + $0xb8] sm:$0xff] %vm1002, %v993
      %1027 = vst.msk [vmem:[%s145 + $0xc0] sm:$0xff] %vm1002, %v994
      %1028 = vst.msk [vmem:[%s145 + $0xc8] sm:$0xff] %vm1002, %v995
      %1029 = vst.msk [vmem:[%s145 + $0xd0] sm:$0xff] %vm1002, %v996
      %1030 = vst.msk [vmem:[%s145 + $0xd8] sm:$0xff] %vm1002, %v997
      %1031 = vst.msk [vmem:[%s145 + $0xe0] sm:$0xff] %vm1002, %v998
      %1032 = vst.msk [vmem:[%s145 + $0xe8] sm:$0xff] %vm1002, %v999
      %1033 = vst.msk [vmem:[%s145 + $0xf0] sm:$0xff] %vm1002, %v1000
      %1034 = vst.msk [vmem:[%s145 + $0xf8] sm:$0xff] %vm1002, %v1001
      %s1035 = smul.u32 32, %s13
      %p1036 = scmp.lt.s32.totalorder %s1035, 63
      %s1037 = scalar_select %p1036, %s1035, 63
      %s1038 = smul.addr %s1037, 8
      %s1039 = scalar_lea.vmem %s2, %s1038
      // Predicated region
      $region29: #{yolo_head_forward.1} parent=27 // pred_check
        %p1040 = pneg %p78
      $region30: #{yolo_head_forward.1} parent=27 // pred_check_branch
        %1042 = sbr.rel (%p1040) target = $region32
      $region31: #{yolo_head_forward.1} parent=27 // pred_region
        %s1043 = smul.u32 32, %s13
      $region32: #{yolo_head_forward.1} parent=27 // pred_fallthru
        _
    $region28: #{yolo_head_forward.1} parent=5 // pred_fallthru
      _
    %p1044 = scmp.le.s32.totalorder 2, %s8
    // Predicated region
    $region33: #{yolo_head_forward.1} parent=5 // pred_check
      %p1045 = pneg %p1044
    $region34: #{yolo_head_forward.1} parent=5 // pred_check_branch
      %1047 = sbr.rel (%p1045) target = $region36
    $region35: #{yolo_head_forward.1} parent=5 // pred_region
      %s1048 = ssub.s32 %s8, 2
      // Predicated region
      $region37: #{yolo_head_forward.1} parent=35 // pred_check
        %p1049 = pneg %p84
      $region38: #{yolo_head_forward.1} parent=35 // pred_check_branch
        %1051 = sbr.rel (%p1049) target = $region40
      $region39: #{yolo_head_forward.1} parent=35 // pred_region
        %s1052 = smul.u32 32, %s14
        %p1053 = scmp.lt.s32.totalorder %s1052, 63
        %s1054 = scalar_select %p1053, %s1052, 63
        %s1055 = smul.addr %s1054, 8
        %s1056 = scalar_lea.vmem %s2, %s1055
      $region40: #{yolo_head_forward.1} parent=35 // pred_fallthru
        _
    $region36: #{yolo_head_forward.1} parent=5 // pred_fallthru
      _
  $region6: #{yolo_head_forward.1} parent=0 // loop_footer
    %s12 = sadd.s32 1, %s8
  $region7: #{yolo_head_forward.1} parent=0 // loop_footer_branch
    %7 = sbr.rel target = $region3
  $region8: #{yolo_head_forward.1} parent=0 // loop_exit
    _

</llo_original>
